<compile_context>
chip_gen: v7x
topology: tpu7x:2x2x1
jax: 0.10.0
libtpu: 0.0.40
codegen_flags: <defaults>
</compile_context>

<pallas_src>
import functools

import jax
import jax.numpy as jnp
import numpy as np
from jax.experimental import pallas as pl
from jax.experimental.pallas import tpu as pltpu


# -----------------------------------------------------------------------------
# Pallas kernel: one grid step == one (sample-block, spatial-tile) pair.
# -----------------------------------------------------------------------------
def _custom_norm_kernel(x_ref, gamma_ref, beta_ref, o_ref, *, eps):
    # x_ref block: (NB, C, TS) -> channels on the sublane axis, spatial on lanes.
    xf = x_ref[...].astype(jnp.float32)                      # (NB, C, TS)
    # Single-pass statistics: E[x] and E[x^2]; avoids keeping a centered
    # (NB, C, TS) f32 temporary live across the reduction.
    mean = jnp.mean(xf, axis=1, keepdims=True)                # (NB, 1, TS) sublane reduce
    mean_sq = jnp.mean(xf * xf, axis=1, keepdims=True)        # (NB, 1, TS)
    var = jnp.maximum(mean_sq - mean * mean, 0.0)             # clamp cancellation noise
    inv = jax.lax.rsqrt(var + eps)                            # EUP slot (free-ish)
    y = (xf - mean) * inv * gamma_ref[...] + beta_ref[...]    # (C, 1) broadcasts over lanes
    o_ref[...] = y.astype(o_ref.dtype)


# -----------------------------------------------------------------------------
# Tile sizing: VMEM-budgeted, generation-aware.
# -----------------------------------------------------------------------------
def _round_up_128(v):
    return ((v + 127) // 128) * 128


def _round_down_128(v):
    return (v // 128) * 128


def _vmem_limit_bytes():
    try:
        cap = int(pltpu.get_tpu_info().vmem_capacity_bytes)
    except Exception:
        cap = 64 << 20  # conservative fallback: v7x physical VMEM per TC
    # Leave headroom for Mosaic internal scratch / spills.
    return int(min(cap * 3 // 4, 100 << 20))


def _choose_tiles(N, C, S, itemsize, block_budget, target_x_bytes):
    """Pick (NB, TS): samples per step and lane-tile size."""
    # Per lane-column VMEM cost: double-buffered x + out blocks plus ~3 live
    # (C, TS) f32 temporaries inside the kernel body.
    col_bytes = C * (4 * itemsize + 3 * 4)
    ts_vmem = max(128, _round_down_128(block_budget // col_bytes))
    ts_target = max(128, _round_up_128(-(-target_x_bytes // (C * itemsize))))
    ts = min(ts_vmem, ts_target)

    # v7x megacore: keep >= 2 grid blocks when there is only one sample.
    if N == 1 and S > 128:
        ts = min(ts, max(128, _round_up_128(-(-S // 2))))

    nb = 1
    if ts >= S:
        ts = S  # full-extent lane block (no 128-multiple requirement then)
        step_x = C * S * itemsize
        if N > 1 and step_x < target_x_bytes:
            nb_vmem = max(1, block_budget // max(1, C * S * (4 * itemsize + 12)))
            nb_target = -(-target_x_bytes // step_x)
            nb = int(max(1, min(nb_target, nb_vmem, N // 2)))  # keep >= 2 N-blocks
    return nb, ts


def custom_norm(x, gamma, beta, *, eps=1e-5, max_ts=None, target_x_bytes=4 << 20):
    """Pallas-backed CustomNorm forward.

    x     : (N, C, D, H, W)  (any float dtype; stats computed in f32)
    gamma : (C,)  LayerNorm weight
    beta  : (C,)  LayerNorm bias
    max_ts: optional cap on the lane tile (testing / tuning only).
    """
    N, C, D, H, W = x.shape
    S = D * H * W
    x3 = x.reshape(N, C, S)

    vmem_limit = _vmem_limit_bytes()
    block_budget = vmem_limit // 2
    nb, ts = _choose_tiles(N, C, S, x.dtype.itemsize, block_budget, target_x_bytes)
    if max_ts is not None:
        ts_cap = max(128, _round_down_128(int(max_ts)))  # never below 128 (robustness)
        if ts_cap < S:
            ts = min(ts, ts_cap)
            nb = 1

    grid = (pl.cdiv(N, nb), pl.cdiv(S, ts))

    g2 = gamma.reshape(C, 1).astype(jnp.float32)
    b2 = beta.reshape(C, 1).astype(jnp.float32)

    kernel = functools.partial(_custom_norm_kernel, eps=float(eps))

    out = pl.pallas_call(
        kernel,
        out_shape=jax.ShapeDtypeStruct((N, C, S), x.dtype),
        grid=grid,
        in_specs=[
            pl.BlockSpec((nb, C, ts), lambda n, s: (n, 0, s)),   # x tile
            pl.BlockSpec((C, 1), lambda n, s: (0, 0)),           # gamma (VMEM-resident)
            pl.BlockSpec((C, 1), lambda n, s: (0, 0)),           # beta  (VMEM-resident)
        ],
        out_specs=pl.BlockSpec((nb, C, ts), lambda n, s: (n, 0, s)),
        compiler_params=pltpu.CompilerParams(
            dimension_semantics=("parallel", "parallel"),
            vmem_limit_bytes=vmem_limit),
    )(x3, g2, b2)

    return out.reshape(N, C, D, H, W)


# -----------------------------------------------------------------------------
# Pure-JAX reference mirroring the PyTorch forward, for validation.
# -----------------------------------------------------------------------------
def ref_forward(x, gamma, beta, eps=1e-5):
    xt = jnp.transpose(x.astype(jnp.float32), (0, 2, 3, 4, 1))   # n d h w c
    mean = xt.mean(-1, keepdims=True)
    var = ((xt - mean) ** 2).mean(-1, keepdims=True)
    y = (xt - mean) / jnp.sqrt(var + eps) * gamma + beta
    return jnp.transpose(y, (0, 4, 1, 2, 3))                     # n c d h w


if __name__ == "__main__":
    key = jax.random.PRNGKey(0)
    ks = jax.random.split(key, 6)

    # Main config: (n, c, d, h, w) = (2, 32, 8, 16, 16)  -> S = 2048.
    N, C, D, H, W = 2, 32, 8, 16, 16
    x = jax.random.normal(ks[0], (N, C, D, H, W), dtype=jnp.float32)
    gamma = 1.0 + 0.1 * jax.random.normal(ks[1], (C,), dtype=jnp.float32)
    beta = 0.1 * jax.random.normal(ks[2], (C,), dtype=jnp.float32)

    out = jax.block_until_ready(custom_norm(x, gamma, beta))
    ref = ref_forward(x, gamma, beta)
    np.testing.assert_allclose(np.asarray(out), np.asarray(ref),
                               rtol=1e-4, atol=1e-4)

    # bf16 I/O path (stats stay f32 inside the kernel).
    x_bf = x.astype(jnp.bfloat16)
    out_bf = jax.block_until_ready(custom_norm(x_bf, gamma, beta))
    ref_bf = ref_forward(x_bf.astype(jnp.float32), gamma, beta)
    np.testing.assert_allclose(np.asarray(out_bf).astype(np.float32),
                               np.asarray(ref_bf), rtol=3e-2, atol=3e-2)

    # Ragged spatial extent: S = 300 forced onto 128-lane tiles (partial last block)
    # and a single sample (exercises the N==1 grid-split path).
    N2, C2, D2, H2, W2 = 1, 16, 3, 10, 10
    x2 = jax.random.normal(ks[3], (N2, C2, D2, H2, W2), dtype=jnp.float32)
    g2 = 1.0 + 0.1 * jax.random.normal(ks[4], (C2,), dtype=jnp.float32)
    b2 = 0.1 * jax.random.normal(ks[5], (C2,), dtype=jnp.float32)
    out2 = jax.block_until_ready(custom_norm(x2, g2, b2, max_ts=128))
    ref2 = ref_forward(x2, g2, b2)
    np.testing.assert_allclose(np.asarray(out2), np.asarray(ref2),
                               rtol=1e-4, atol=1e-4)

    print("KERNEL_OK")
</pallas_src>

<mosaic_0001>
module attributes {stable_mosaic.version = 11 : i64} {
  func.func @_custom_norm_kernel(%arg0: i32, %arg1: i32, %arg2: memref<1x32x2048xf32, #tpu.memory_space<vmem>>, %arg3: memref<32x1xf32, #tpu.memory_space<vmem>>, %arg4: memref<32x1xf32, #tpu.memory_space<vmem>>, %arg5: memref<1x32x2048xf32, #tpu.memory_space<vmem>>) attributes {dimension_semantics = [#tpu.dimension_semantics<parallel>, #tpu.dimension_semantics<parallel>], iteration_bounds = array<i64: 2, 1>, scalar_prefetch = 0 : i64, scratch_operands = 0 : i64, tpu.core_type = #tpu.core_type<tc>, window_params = [{transform_indices = @transform_0, window_bounds = array<i64: 1, 32, 2048>}, {pipeline_mode = #tpu.pipeline_mode<synchronous>, transform_indices = @transform_1, window_bounds = array<i64: 32, 1>}, {pipeline_mode = #tpu.pipeline_mode<synchronous>, transform_indices = @transform_2, window_bounds = array<i64: 32, 1>}, {transform_indices = @transform_3, window_bounds = array<i64: 1, 32, 2048>}]} {
    %c0 = arith.constant 0 : index
    %c0_0 = arith.constant 0 : index
    %c0_1 = arith.constant 0 : index
    %0 = vector.load %arg2[%c0, %c0_0, %c0_1] : memref<1x32x2048xf32, #tpu.memory_space<vmem>>, vector<1x32x2048xf32>
    %cst = arith.constant dense<0.000000e+00> : vector<1x2048xf32>
    %1 = vector.multi_reduction <add>, %0, %cst [1] : vector<1x32x2048xf32> to vector<1x2048xf32>
    %2 = vector.shape_cast %1 : vector<1x2048xf32> to vector<1x1x2048xf32>
    %cst_2 = arith.constant 3.200000e+01 : f32
    %3 = vector.broadcast %cst_2 : f32 to vector<1x1x2048xf32>
    %4 = arith.divf %2, %3 : vector<1x1x2048xf32>
    %5 = arith.mulf %0, %0 : vector<1x32x2048xf32>
    %cst_3 = arith.constant dense<0.000000e+00> : vector<1x2048xf32>
    %6 = vector.multi_reduction <add>, %5, %cst_3 [1] : vector<1x32x2048xf32> to vector<1x2048xf32>
    %7 = vector.shape_cast %6 : vector<1x2048xf32> to vector<1x1x2048xf32>
    %cst_4 = arith.constant 3.200000e+01 : f32
    %8 = vector.broadcast %cst_4 : f32 to vector<1x1x2048xf32>
    %9 = arith.divf %7, %8 : vector<1x1x2048xf32>
    %10 = arith.mulf %4, %4 : vector<1x1x2048xf32>
    %11 = arith.subf %9, %10 : vector<1x1x2048xf32>
    %cst_5 = arith.constant 0.000000e+00 : f32
    %12 = vector.broadcast %cst_5 : f32 to vector<1x1x2048xf32>
    %13 = arith.maximumf %11, %12 : vector<1x1x2048xf32>
    %cst_6 = arith.constant 9.99999974E-6 : f32
    %14 = vector.broadcast %cst_6 : f32 to vector<1x1x2048xf32>
    %15 = arith.addf %13, %14 : vector<1x1x2048xf32>
    %16 = math.rsqrt %15 : vector<1x1x2048xf32>
    %17 = vector.broadcast %4 : vector<1x1x2048xf32> to vector<1x32x2048xf32>
    %18 = arith.subf %0, %17 : vector<1x32x2048xf32>
    %19 = vector.broadcast %16 : vector<1x1x2048xf32> to vector<1x32x2048xf32>
    %20 = arith.mulf %18, %19 : vector<1x32x2048xf32>
    %c0_7 = arith.constant 0 : index
    %c0_8 = arith.constant 0 : index
    %21 = vector.load %arg3[%c0_7, %c0_8] : memref<32x1xf32, #tpu.memory_space<vmem>>, vector<32x1xf32>
    %22 = vector.shape_cast %21 : vector<32x1xf32> to vector<1x32x1xf32>
    %23 = vector.broadcast %22 : vector<1x32x1xf32> to vector<1x32x2048xf32>
    %24 = arith.mulf %20, %23 : vector<1x32x2048xf32>
    %c0_9 = arith.constant 0 : index
    %c0_10 = arith.constant 0 : index
    %25 = vector.load %arg4[%c0_9, %c0_10] : memref<32x1xf32, #tpu.memory_space<vmem>>, vector<32x1xf32>
    %26 = vector.shape_cast %25 : vector<32x1xf32> to vector<1x32x1xf32>
    %27 = vector.broadcast %26 : vector<1x32x1xf32> to vector<1x32x2048xf32>
    %28 = arith.addf %24, %27 : vector<1x32x2048xf32>
    %c0_11 = arith.constant 0 : index
    %c0_12 = arith.constant 0 : index
    %c0_13 = arith.constant 0 : index
    %29 = vector.load %arg5[%c0_11, %c0_12, %c0_13] : memref<1x32x2048xf32, #tpu.memory_space<vmem>>, vector<1x32x2048xf32>
    tpu.vector_store %arg5[%c0_11, %c0_12, %c0_13], %28 {strides = array<i32>} : memref<1x32x2048xf32, #tpu.memory_space<vmem>>, vector<1x32x2048xf32>,
    return
  }
  func.func @transform_0(%arg0: i32, %arg1: i32) -> (i32, i32, i32) {
    %c0_i32 = arith.constant 0 : i32
    %c0_i32_0 = arith.constant 0 : i32
    return %arg0, %c0_i32, %arg1 : i32, i32, i32
  }
  func.func @transform_1(%arg0: i32, %arg1: i32) -> (i32, i32) {
    %c0_i32 = arith.constant 0 : i32
    %c0_i32_0 = arith.constant 0 : i32
    %c0_i32_1 = arith.constant 0 : i32
    return %c0_i32, %c0_i32_0 : i32, i32
  }
  func.func @transform_2(%arg0: i32, %arg1: i32) -> (i32, i32) {
    %c0_i32 = arith.constant 0 : i32
    %c0_i32_0 = arith.constant 0 : i32
    %c0_i32_1 = arith.constant 0 : i32
    return %c0_i32, %c0_i32_0 : i32, i32
  }
  func.func @transform_3(%arg0: i32, %arg1: i32) -> (i32, i32, i32) {
    %c0_i32 = arith.constant 0 : i32
    %c0_i32_0 = arith.constant 0 : i32
    return %arg0, %c0_i32, %arg1 : i32, i32, i32
  }
}

</mosaic_0001>

<llo_original>
// kernel: tpu_custom_call.1
$region0: #{tpu_custom_call.1}
  #allocation0 [shape = 'u32[]', space=smem, size = 0x4, offset = 0x4, fixed_abs, tag = 'smem constant byte address 0x4 - core index']
  #allocation1 [shape = 'u32[144,128]{1,0:T(1,128)}', space=vmem, size = 0x12000, scoped, tag = 'internal scratch']
  %s0 = inlined_call_operand.hbm [shape: f32[2,32,2048], index: 0, kind: input, shape index: {}]
  %s1 = inlined_call_operand.vmem [shape: f32[32,1], index: 1, kind: input, shape index: {}]
  %s2 = inlined_call_operand.vmem [shape: f32[32,1], index: 2, kind: input, shape index: {}]
  %s3 = inlined_call_operand.hbm [shape: f32[2,32,2048], index: 3, kind: output, shape index: {}]
  %s4 = sld [smem:[#allocation0]]
  $region49: #{tpu_custom_call.1} parent=0
    _
  %s6 = ssub.s32 1, %s4
  %s7 = scalar_select 0, %s6, %s4
  $region1: #{tpu_custom_call.1} parent=0
    #allocation2 [shape = 'u8[524288]{0}', space=vmem, size = 0x80000, scoped, tag = 'input window, operand 0']
    #allocation3 [shape = 's32[2]{0}', space=sflag, size = 0x8, scoped, tag = 'scoped memory for tpu_custom_call.1']
    #allocation4 [shape = 's32[2]{0}', space=sflag, size = 0x8, scoped, tag = 'scoped memory for tpu_custom_call.1']
    #allocation5 [shape = 'u8[524288]{0}', space=vmem, size = 0x80000, scoped, tag = 'output window, operand 0']
    %8 = vsyncpa [#allocation3], 0
    %s9 = scalar_lea.sflag [#allocation3], 1
    %10 = vsyncpa %s9, 0
    %11 = vsyncpa [#allocation4], 0
    %s12 = scalar_lea.sflag [#allocation4], 1
    %13 = vsyncpa %s12, 0
    loop: start=0, step=1, limit=4
    $region2: #{tpu_custom_call.1} parent=1 // loop_pre_header
      _
    $region3: #{tpu_custom_call.1} parent=1 // loop_header
      %s15 = sphi 0, %s19
      %p16 = scmp.ge.s32.totalorder %s15, 4
      %s22 = sphi 0, %s34
      %s23 = sphi 0, %s30
      %s24 = sphi 0, %s22
      %s25 = sphi 0, %s23
      %s26 = sphi 0, %s24
      %s27 = sphi 0, %s25
      %s39 = sphi 0, %s41
      %s42 = sphi 0, %s39
      %s43 = sphi 0, %s42
      %s59 = sphi 0, %s43
      %s63 = sphi 0, %s63
      %s65 = sphi 0, %s63
      %s66 = sphi 0, %s65
      %s80 = sphi 0, %s66
      %s84 = sphi 0, %s84
      %s86 = sphi 0, %s84
      %s87 = sphi 0, %s86
      %s101 = sphi 0, %s87
      %s109 = sphi 0, %s111
      %s112 = sphi 0, %s109
      %s113 = sphi 0, %s112
      %s129 = sphi 0, %s113
    $region4: #{tpu_custom_call.1} parent=1 // loop_header_branch
      %18 = sbr.rel (%p16) target = $region8
    $region5: #{tpu_custom_call.1} parent=1 // loop_body
      %s20 = ssub.s32 %s15, 1
      %s21 = ssub.s32 %s15, 2
      %s28 = sadd.s32 1, %s23
      %p29 = scmp.ge.s32.totalorder %s28, 1
      %s30 = scalar_select %p29, 0, %s28
      %s31 = sadd.s32 1, %s22
      %s32 = scalar_select %p29, %s31, %s22
      %p33 = scmp.ge.s32.totalorder %s32, 2
      %s34 = scalar_select %p33, 0, %s32
      %s35 = ssub.s32 %s22, %s34
      %s36 = ssub.s32 %s23, %s30
      %s37 = sor.u32 %s35, %s36
      %p38 = scmp.eq.s32.totalorder %s37, 0
      %s40 = sadd.s32 %s39, 1
      %s41 = scalar_select %p38, %s39, %s40
      %p44 = pneg %p38
      %p45 = scmp.eq.s32.totalorder %s15, 1
      %p46 = por %p44, %p45
      %p47 = scmp.ne.s32.totalorder %s39, %s42
      %p48 = scmp.eq.s32.totalorder %s15, 0
      %p49 = por %p47, %p48
      %p50 = scmp.ne.s32.totalorder %s39, %s42
      %p51 = scmp.eq.s32.totalorder %s20, 1
      %p52 = por %p50, %p51
      %p53 = scmp.ne.s32.totalorder %s42, %s43
      %p54 = scmp.eq.s32.totalorder %s20, 0
      %p55 = por %p53, %p54
      %p56 = scmp.ne.s32.totalorder %s42, %s43
      %p57 = scmp.eq.s32.totalorder %s21, 1
      %p58 = por %p56, %p57
      %p60 = scmp.ne.s32.totalorder %s43, %s59
      %p61 = scmp.eq.s32.totalorder %s21, 0
      %p62 = por %p60, %p61
      %s64 = sadd.s32 %s63, 1
      %p67 = scmp.eq.s32.totalorder %s15, 1
      %p68 = scmp.ne.s32.totalorder %s63, %s65
      %p69 = scmp.eq.s32.totalorder %s15, 0
      %p70 = por %p68, %p69
      %p71 = scmp.ne.s32.totalorder %s63, %s65
      %p72 = scmp.eq.s32.totalorder %s20, 1
      %p73 = por %p71, %p72
      %p74 = scmp.ne.s32.totalorder %s65, %s66
      %p75 = scmp.eq.s32.totalorder %s20, 0
      %p76 = por %p74, %p75
      %p77 = scmp.ne.s32.totalorder %s65, %s66
      %p78 = scmp.eq.s32.totalorder %s21, 1
      %p79 = por %p77, %p78
      %p81 = scmp.ne.s32.totalorder %s66, %s80
      %p82 = scmp.eq.s32.totalorder %s21, 0
      %p83 = por %p81, %p82
      %s85 = sadd.s32 %s84, 1
      %p88 = scmp.eq.s32.totalorder %s15, 1
      %p89 = scmp.ne.s32.totalorder %s84, %s86
      %p90 = scmp.eq.s32.totalorder %s15, 0
      %p91 = por %p89, %p90
      %p92 = scmp.ne.s32.totalorder %s84, %s86
      %p93 = scmp.eq.s32.totalorder %s20, 1
      %p94 = por %p92, %p93
      %p95 = scmp.ne.s32.totalorder %s86, %s87
      %p96 = scmp.eq.s32.totalorder %s20, 0
      %p97 = por %p95, %p96
      %p98 = scmp.ne.s32.totalorder %s86, %s87
      %p99 = scmp.eq.s32.totalorder %s21, 1
      %p100 = por %p98, %p99
      %p102 = scmp.ne.s32.totalorder %s87, %s101
      %p103 = scmp.eq.s32.totalorder %s21, 0
      %p104 = por %p102, %p103
      %s105 = ssub.s32 %s22, %s34
      %s106 = ssub.s32 %s23, %s30
      %s107 = sor.u32 %s105, %s106
      %p108 = scmp.eq.s32.totalorder %s107, 0
      %s110 = sadd.s32 %s109, 1
      %s111 = scalar_select %p108, %s109, %s110
      %p114 = pneg %p108
      %p115 = scmp.eq.s32.totalorder %s15, 1
      %p116 = por %p114, %p115
      %p117 = scmp.ne.s32.totalorder %s109, %s112
      %p118 = scmp.eq.s32.totalorder %s15, 0
      %p119 = por %p117, %p118
      %p120 = scmp.ne.s32.totalorder %s109, %s112
      %p121 = scmp.eq.s32.totalorder %s20, 1
      %p122 = por %p120, %p121
      %p123 = scmp.ne.s32.totalorder %s112, %s113
      %p124 = scmp.eq.s32.totalorder %s20, 0
      %p125 = por %p123, %p124
      %p126 = scmp.ne.s32.totalorder %s112, %s113
      %p127 = scmp.eq.s32.totalorder %s21, 1
      %p128 = por %p126, %p127
      %p130 = scmp.ne.s32.totalorder %s113, %s129
      %p131 = scmp.eq.s32.totalorder %s21, 0
      %p132 = por %p130, %p131
      %p133 = scmp.le.s32.totalorder 1, %s15
      %p134 = scmp.lt.s32.totalorder %s15, 3
      %p135 = pnand %p133, %p134
      %p136 = pneg %p135
      // Predicated region
      $region9: #{tpu_custom_call.1} parent=5 // pred_check
        _
      $region10: #{tpu_custom_call.1} parent=5 // pred_check_branch
        %138 = sbr.rel (%p135) target = $region12
      $region11: #{tpu_custom_call.1} parent=5 // pred_region
        %s139 = ssub.s32 %s15, 1
        // Predicated region
        $region13: #{tpu_custom_call.1} parent=11 // pred_check
          %p140 = pneg %p76
        $region14: #{tpu_custom_call.1} parent=11 // pred_check_branch
          %142 = sbr.rel (%p140) target = $region16
        $region15: #{tpu_custom_call.1} parent=11 // pred_region
          _
        $region16: #{tpu_custom_call.1} parent=11 // pred_fallthru
          _
        // Predicated region
        $region17: #{tpu_custom_call.1} parent=11 // pred_check
          %p143 = pneg %p97
        $region18: #{tpu_custom_call.1} parent=11 // pred_check_branch
          %145 = sbr.rel (%p143) target = $region20
        $region19: #{tpu_custom_call.1} parent=11 // pred_region
          _
        $region20: #{tpu_custom_call.1} parent=11 // pred_fallthru
          _
      $region12: #{tpu_custom_call.1} parent=5 // pred_fallthru
        _
      %p146 = scmp.lt.s32.totalorder %s15, 2
      // Predicated region
      $region21: #{tpu_custom_call.1} parent=5 // pred_check
        %p147 = pneg %p146
      $region22: #{tpu_custom_call.1} parent=5 // pred_check_branch
        %149 = sbr.rel (%p147) target = $region24
      $region23: #{tpu_custom_call.1} parent=5 // pred_region
        // Predicated region
        $region25: #{tpu_custom_call.1} parent=23 // pred_check
          %p150 = pneg %p49
        $region26: #{tpu_custom_call.1} parent=23 // pred_check_branch
          %152 = sbr.rel (%p150) target = $region28
        $region27: #{tpu_custom_call.1} parent=23 // pred_region
          %s153 = sand.u32 %s39, 1
          %s154 = scalar_lea.sflag [#allocation3], %s153
          %s155 = sand.u32 %s39, 1
          %s156 = smul.addr %s155, 512
          %s157 = scalar_lea.vmem [#allocation2], %s156
          %s158 = smul.u32 16, %s23
          %s160 = ssub.s32 8192, 8192
          %161 = vsyncadd %s154, %s160
          %s162 = smul.addr %s22, 64
          %s163 = sadd.s32 %s158, %s162
          %s164 = smul.addr %s163, 128
          %s165 = scalar_lea.hbm %s0, %s164
          %s166 = sshll.u32 %s157, 4
          %s167 = int_to_ptr.vmem [resolvable:$true] %s166
          %172 = dma.hbm_to_vmem [thread:$0]  %s165, 8192, %s167, %s154, 2048, 2048, 128
        $region28: #{tpu_custom_call.1} parent=23 // pred_fallthru
          _
      $region24: #{tpu_custom_call.1} parent=5 // pred_fallthru
        _
      %p173 = scmp.le.s32.totalorder 1, %s15
      %p174 = scmp.lt.s32.totalorder %s15, 3
      %p175 = pnand %p173, %p174
      %p176 = pneg %p175
      // Predicated region
      $region29: #{tpu_custom_call.1} parent=5 // pred_check
        _
      $region30: #{tpu_custom_call.1} parent=5 // pred_check_branch
        %178 = sbr.rel (%p175) target = $region32
      $region31: #{tpu_custom_call.1} parent=5 // pred_region
        %s179 = ssub.s32 %s15, 1
        %s180 = sand.u32 %s42, 1
        %s181 = scalar_lea.sflag [#allocation3], %s180
        %s182 = sand.u32 %s42, 1
        %s183 = smul.addr %s182, 512
        %s184 = scalar_lea.vmem [#allocation2], %s183
        // Predicated region
        $region33: #{tpu_custom_call.1} parent=31 // pred_check
          %p185 = pneg %p55
        $region34: #{tpu_custom_call.1} parent=31 // pred_check_branch
          %187 = sbr.rel (%p185) target = $region36
        $region35: #{tpu_custom_call.1} parent=31 // pred_region
          %188 = dma.done %s181, 8192
        $region36: #{tpu_custom_call.1} parent=31 // pred_fallthru
          _
        %s189 = sand.u32 %s42, 1
        %s190 = scalar_lea.sflag [#allocation3], %s189
        %s191 = sand.u32 %s42, 1
        %s192 = smul.addr %s191, 512
        %s193 = scalar_lea.vmem [#allocation2], %s192
        %p194 = pneg %p55
        %p195 = pneg %p52
        %p196 = pneg %p76
        %p197 = pneg %p73
        %p198 = pneg %p97
        %p199 = pneg %p94
        %p200 = pneg %p125
        %p201 = pneg %p122
        %s202 = sand.u32 %s112, 1
        %s203 = scalar_lea.sflag [#allocation4], %s202
        %s204 = sand.u32 %s112, 1
        %s205 = smul.addr %s204, 512
        %s206 = scalar_lea.vmem [#allocation5], %s205
        %s207 = smul.u32 16, %s25
        %s208 = smul.u32 16, %s25
        %v209 = vld [vmem:[%s184] sm:$0xff]
        %v210 = vld [vmem:[%s184 + $0x8] sm:$0xff]
        %v211 = vld [vmem:[%s184 + $0x10] sm:$0xff]
        %v212 = vld [vmem:[%s184 + $0x18] sm:$0xff]
        %v213 = vld [vmem:[%s184 + $0x20] sm:$0xff]
        %v214 = vld [vmem:[%s184 + $0x28] sm:$0xff]
        %v215 = vld [vmem:[%s184 + $0x30] sm:$0xff]
        %v216 = vld [vmem:[%s184 + $0x38] sm:$0xff]
        %v217 = vld [vmem:[%s184 + $0x40] sm:$0xff]
        %v218 = vld [vmem:[%s184 + $0x48] sm:$0xff]
        %v219 = vld [vmem:[%s184 + $0x50] sm:$0xff]
        %v220 = vld [vmem:[%s184 + $0x58] sm:$0xff]
        %v221 = vld [vmem:[%s184 + $0x60] sm:$0xff]
        %v222 = vld [vmem:[%s184 + $0x68] sm:$0xff]
        %v223 = vld [vmem:[%s184 + $0x70] sm:$0xff]
        %v224 = vld [vmem:[%s184 + $0x78] sm:$0xff]
        %v225 = vld [vmem:[%s184 + $0x80] sm:$0xff]
        %v226 = vld [vmem:[%s184 + $0x88] sm:$0xff]
        %v227 = vld [vmem:[%s184 + $0x90] sm:$0xff]
        %v228 = vld [vmem:[%s184 + $0x98] sm:$0xff]
        %v229 = vld [vmem:[%s184 + $0xa0] sm:$0xff]
        %v230 = vld [vmem:[%s184 + $0xa8] sm:$0xff]
        %v231 = vld [vmem:[%s184 + $0xb0] sm:$0xff]
        %v232 = vld [vmem:[%s184 + $0xb8] sm:$0xff]
        %v233 = vld [vmem:[%s184 + $0xc0] sm:$0xff]
        %v234 = vld [vmem:[%s184 + $0xc8] sm:$0xff]
        %v235 = vld [vmem:[%s184 + $0xd0] sm:$0xff]
        %v236 = vld [vmem:[%s184 + $0xd8] sm:$0xff]
        %v237 = vld [vmem:[%s184 + $0xe0] sm:$0xff]
        %v238 = vld [vmem:[%s184 + $0xe8] sm:$0xff]
        %v239 = vld [vmem:[%s184 + $0xf0] sm:$0xff]
        %v240 = vld [vmem:[%s184 + $0xf8] sm:$0xff]
        %v241 = vld [vmem:[%s184 + $0x100] sm:$0xff]
        %v242 = vld [vmem:[%s184 + $0x108] sm:$0xff]
        %v243 = vld [vmem:[%s184 + $0x110] sm:$0xff]
        %v244 = vld [vmem:[%s184 + $0x118] sm:$0xff]
        %v245 = vld [vmem:[%s184 + $0x120] sm:$0xff]
        %v246 = vld [vmem:[%s184 + $0x128] sm:$0xff]
        %v247 = vld [vmem:[%s184 + $0x130] sm:$0xff]
        %v248 = vld [vmem:[%s184 + $0x138] sm:$0xff]
        %v249 = vld [vmem:[%s184 + $0x140] sm:$0xff]
        %v250 = vld [vmem:[%s184 + $0x148] sm:$0xff]
        %v251 = vld [vmem:[%s184 + $0x150] sm:$0xff]
        %v252 = vld [vmem:[%s184 + $0x158] sm:$0xff]
        %v253 = vld [vmem:[%s184 + $0x160] sm:$0xff]
        %v254 = vld [vmem:[%s184 + $0x168] sm:$0xff]
        %v255 = vld [vmem:[%s184 + $0x170] sm:$0xff]
        %v256 = vld [vmem:[%s184 + $0x178] sm:$0xff]
        %v257 = vld [vmem:[%s184 + $0x180] sm:$0xff]
        %v258 = vld [vmem:[%s184 + $0x188] sm:$0xff]
        %v259 = vld [vmem:[%s184 + $0x190] sm:$0xff]
        %v260 = vld [vmem:[%s184 + $0x198] sm:$0xff]
        %v261 = vld [vmem:[%s184 + $0x1a0] sm:$0xff]
        %v262 = vld [vmem:[%s184 + $0x1a8] sm:$0xff]
        %v263 = vld [vmem:[%s184 + $0x1b0] sm:$0xff]
        %v264 = vld [vmem:[%s184 + $0x1b8] sm:$0xff]
        %v265 = vld [vmem:[%s184 + $0x1c0] sm:$0xff]
        %v266 = vld [vmem:[%s184 + $0x1c8] sm:$0xff]
        %v267 = vld [vmem:[%s184 + $0x1d0] sm:$0xff]
        %v268 = vld [vmem:[%s184 + $0x1d8] sm:$0xff]
        %v269 = vld [vmem:[%s184 + $0x1e0] sm:$0xff]
        %v270 = vld [vmem:[%s184 + $0x1e8] sm:$0xff]
        %v271 = vld [vmem:[%s184 + $0x1f0] sm:$0xff]
        %v272 = vld [vmem:[%s184 + $0x1f8] sm:$0xff]
        %v273 = vadd.f32 %v209, %v225
        %v274 = vadd.f32 %v273, %v241
        %v275 = vadd.f32 %v274, %v257
        %v276 = vrot.slane %v275, 4
        %v277 = vadd.f32 %v275, %v276
        %v278 = vrot.slane %v277, 2
        %v279 = vadd.f32 %v277, %v278
        %v280 = vrot.slane %v279, 1
        %v281 = vadd.f32 %v279, %v280
        %v282 = vadd.f32 %v210, %v226
        %v283 = vadd.f32 %v282, %v242
        %v284 = vadd.f32 %v283, %v258
        %v285 = vrot.slane %v284, 4
        %v286 = vadd.f32 %v284, %v285
        %v287 = vrot.slane %v286, 2
        %v288 = vadd.f32 %v286, %v287
        %v289 = vrot.slane %v288, 1
        %v290 = vadd.f32 %v288, %v289
        %v291 = vadd.f32 %v211, %v227
        %v292 = vadd.f32 %v291, %v243
        %v293 = vadd.f32 %v292, %v259
        %v294 = vrot.slane %v293, 4
        %v295 = vadd.f32 %v293, %v294
        %v296 = vrot.slane %v295, 2
        %v297 = vadd.f32 %v295, %v296
        %v298 = vrot.slane %v297, 1
        %v299 = vadd.f32 %v297, %v298
        %v300 = vadd.f32 %v212, %v228
        %v301 = vadd.f32 %v300, %v244
        %v302 = vadd.f32 %v301, %v260
        %v303 = vrot.slane %v302, 4
        %v304 = vadd.f32 %v302, %v303
        %v305 = vrot.slane %v304, 2
        %v306 = vadd.f32 %v304, %v305
        %v307 = vrot.slane %v306, 1
        %v308 = vadd.f32 %v306, %v307
        %v309 = vadd.f32 %v213, %v229
        %v310 = vadd.f32 %v309, %v245
        %v311 = vadd.f32 %v310, %v261
        %v312 = vrot.slane %v311, 4
        %v313 = vadd.f32 %v311, %v312
        %v314 = vrot.slane %v313, 2
        %v315 = vadd.f32 %v313, %v314
        %v316 = vrot.slane %v315, 1
        %v317 = vadd.f32 %v315, %v316
        %v318 = vadd.f32 %v214, %v230
        %v319 = vadd.f32 %v318, %v246
        %v320 = vadd.f32 %v319, %v262
        %v321 = vrot.slane %v320, 4
        %v322 = vadd.f32 %v320, %v321
        %v323 = vrot.slane %v322, 2
        %v324 = vadd.f32 %v322, %v323
        %v325 = vrot.slane %v324, 1
        %v326 = vadd.f32 %v324, %v325
        %v327 = vadd.f32 %v215, %v231
        %v328 = vadd.f32 %v327, %v247
        %v329 = vadd.f32 %v328, %v263
        %v330 = vrot.slane %v329, 4
        %v331 = vadd.f32 %v329, %v330
        %v332 = vrot.slane %v331, 2
        %v333 = vadd.f32 %v331, %v332
        %v334 = vrot.slane %v333, 1
        %v335 = vadd.f32 %v333, %v334
        %v336 = vadd.f32 %v216, %v232
        %v337 = vadd.f32 %v336, %v248
        %v338 = vadd.f32 %v337, %v264
        %v339 = vrot.slane %v338, 4
        %v340 = vadd.f32 %v338, %v339
        %v341 = vrot.slane %v340, 2
        %v342 = vadd.f32 %v340, %v341
        %v343 = vrot.slane %v342, 1
        %v344 = vadd.f32 %v342, %v343
        %v345 = vadd.f32 %v217, %v233
        %v346 = vadd.f32 %v345, %v249
        %v347 = vadd.f32 %v346, %v265
        %v348 = vrot.slane %v347, 4
        %v349 = vadd.f32 %v347, %v348
        %v350 = vrot.slane %v349, 2
        %v351 = vadd.f32 %v349, %v350
        %v352 = vrot.slane %v351, 1
        %v353 = vadd.f32 %v351, %v352
        %v354 = vadd.f32 %v218, %v234
        %v355 = vadd.f32 %v354, %v250
        %v356 = vadd.f32 %v355, %v266
        %v357 = vrot.slane %v356, 4
        %v358 = vadd.f32 %v356, %v357
        %v359 = vrot.slane %v358, 2
        %v360 = vadd.f32 %v358, %v359
        %v361 = vrot.slane %v360, 1
        %v362 = vadd.f32 %v360, %v361
        %v363 = vadd.f32 %v219, %v235
        %v364 = vadd.f32 %v363, %v251
        %v365 = vadd.f32 %v364, %v267
        %v366 = vrot.slane %v365, 4
        %v367 = vadd.f32 %v365, %v366
        %v368 = vrot.slane %v367, 2
        %v369 = vadd.f32 %v367, %v368
        %v370 = vrot.slane %v369, 1
        %v371 = vadd.f32 %v369, %v370
        %v372 = vadd.f32 %v220, %v236
        %v373 = vadd.f32 %v372, %v252
        %v374 = vadd.f32 %v373, %v268
        %v375 = vrot.slane %v374, 4
        %v376 = vadd.f32 %v374, %v375
        %v377 = vrot.slane %v376, 2
        %v378 = vadd.f32 %v376, %v377
        %v379 = vrot.slane %v378, 1
        %v380 = vadd.f32 %v378, %v379
        %v381 = vadd.f32 %v221, %v237
        %v382 = vadd.f32 %v381, %v253
        %v383 = vadd.f32 %v382, %v269
        %v384 = vrot.slane %v383, 4
        %v385 = vadd.f32 %v383, %v384
        %v386 = vrot.slane %v385, 2
        %v387 = vadd.f32 %v385, %v386
        %v388 = vrot.slane %v387, 1
        %v389 = vadd.f32 %v387, %v388
        %v390 = vadd.f32 %v222, %v238
        %v391 = vadd.f32 %v390, %v254
        %v392 = vadd.f32 %v391, %v270
        %v393 = vrot.slane %v392, 4
        %v394 = vadd.f32 %v392, %v393
        %v395 = vrot.slane %v394, 2
        %v396 = vadd.f32 %v394, %v395
        %v397 = vrot.slane %v396, 1
        %v398 = vadd.f32 %v396, %v397
        %v399 = vadd.f32 %v223, %v239
        %v400 = vadd.f32 %v399, %v255
        %v401 = vadd.f32 %v400, %v271
        %v402 = vrot.slane %v401, 4
        %v403 = vadd.f32 %v401, %v402
        %v404 = vrot.slane %v403, 2
        %v405 = vadd.f32 %v403, %v404
        %v406 = vrot.slane %v405, 1
        %v407 = vadd.f32 %v405, %v406
        %v408 = vadd.f32 %v224, %v240
        %v409 = vadd.f32 %v408, %v256
        %v410 = vadd.f32 %v409, %v272
        %v411 = vrot.slane %v410, 4
        %v412 = vadd.f32 %v410, %v411
        %v413 = vrot.slane %v412, 2
        %v414 = vadd.f32 %v412, %v413
        %v415 = vrot.slane %v414, 1
        %v416 = vadd.f32 %v414, %v415
        %v417 = vrcp.pop 32.0
        %v418 = vmul.f32 %v281, %v417
        %v419 = vmul.f32 %v290, %v417
        %v420 = vmul.f32 %v299, %v417
        %v421 = vmul.f32 %v308, %v417
        %v422 = vmul.f32 %v317, %v417
        %v423 = vmul.f32 %v326, %v417
        %v424 = vmul.f32 %v335, %v417
        %v425 = vmul.f32 %v344, %v417
        %v426 = vmul.f32 %v353, %v417
        %v427 = vmul.f32 %v362, %v417
        %v428 = vmul.f32 %v371, %v417
        %v429 = vmul.f32 %v380, %v417
        %v430 = vmul.f32 %v389, %v417
        %v431 = vmul.f32 %v398, %v417
        %v432 = vmul.f32 %v407, %v417
        %v433 = vmul.f32 %v416, %v417
        %v434 = vmul.f32 %v209, %v209
        %v435 = vmul.f32 %v210, %v210
        %v436 = vmul.f32 %v211, %v211
        %v437 = vmul.f32 %v212, %v212
        %v438 = vmul.f32 %v213, %v213
        %v439 = vmul.f32 %v214, %v214
        %v440 = vmul.f32 %v215, %v215
        %v441 = vmul.f32 %v216, %v216
        %v442 = vmul.f32 %v217, %v217
        %v443 = vmul.f32 %v218, %v218
        %v444 = vmul.f32 %v219, %v219
        %v445 = vmul.f32 %v220, %v220
        %v446 = vmul.f32 %v221, %v221
        %v447 = vmul.f32 %v222, %v222
        %v448 = vmul.f32 %v223, %v223
        %v449 = vmul.f32 %v224, %v224
        %v450 = vmul.f32 %v225, %v225
        %v451 = vmul.f32 %v226, %v226
        %v452 = vmul.f32 %v227, %v227
        %v453 = vmul.f32 %v228, %v228
        %v454 = vmul.f32 %v229, %v229
        %v455 = vmul.f32 %v230, %v230
        %v456 = vmul.f32 %v231, %v231
        %v457 = vmul.f32 %v232, %v232
        %v458 = vmul.f32 %v233, %v233
        %v459 = vmul.f32 %v234, %v234
        %v460 = vmul.f32 %v235, %v235
        %v461 = vmul.f32 %v236, %v236
        %v462 = vmul.f32 %v237, %v237
        %v463 = vmul.f32 %v238, %v238
        %v464 = vmul.f32 %v239, %v239
        %v465 = vmul.f32 %v240, %v240
        %v466 = vmul.f32 %v241, %v241
        %v467 = vmul.f32 %v242, %v242
        %v468 = vmul.f32 %v243, %v243
        %v469 = vmul.f32 %v244, %v244
        %v470 = vmul.f32 %v245, %v245
        %v471 = vmul.f32 %v246, %v246
        %v472 = vmul.f32 %v247, %v247
        %v473 = vmul.f32 %v248, %v248
        %v474 = vmul.f32 %v249, %v249
        %v475 = vmul.f32 %v250, %v250
        %v476 = vmul.f32 %v251, %v251
        %v477 = vmul.f32 %v252, %v252
        %v478 = vmul.f32 %v253, %v253
        %v479 = vmul.f32 %v254, %v254
        %v480 = vmul.f32 %v255, %v255
        %v481 = vmul.f32 %v256, %v256
        %v482 = vmul.f32 %v257, %v257
        %v483 = vmul.f32 %v258, %v258
        %v484 = vmul.f32 %v259, %v259
        %v485 = vmul.f32 %v260, %v260
        %v486 = vmul.f32 %v261, %v261
        %v487 = vmul.f32 %v262, %v262
        %v488 = vmul.f32 %v263, %v263
        %v489 = vmul.f32 %v264, %v264
        %v490 = vmul.f32 %v265, %v265
        %v491 = vmul.f32 %v266, %v266
        %v492 = vmul.f32 %v267, %v267
        %v493 = vmul.f32 %v268, %v268
        %v494 = vmul.f32 %v269, %v269
        %v495 = vmul.f32 %v270, %v270
        %v496 = vmul.f32 %v271, %v271
        %v497 = vmul.f32 %v272, %v272
        %v498 = vadd.f32 %v434, %v450
        %v499 = vadd.f32 %v498, %v466
        %v500 = vadd.f32 %v499, %v482
        %v501 = vrot.slane %v500, 4
        %v502 = vadd.f32 %v500, %v501
        %v503 = vrot.slane %v502, 2
        %v504 = vadd.f32 %v502, %v503
        %v505 = vrot.slane %v504, 1
        %v506 = vadd.f32 %v504, %v505
        %v507 = vadd.f32 %v435, %v451
        %v508 = vadd.f32 %v507, %v467
        %v509 = vadd.f32 %v508, %v483
        %v510 = vrot.slane %v509, 4
        %v511 = vadd.f32 %v509, %v510
        %v512 = vrot.slane %v511, 2
        %v513 = vadd.f32 %v511, %v512
        %v514 = vrot.slane %v513, 1
        %v515 = vadd.f32 %v513, %v514
        %v516 = vadd.f32 %v436, %v452
        %v517 = vadd.f32 %v516, %v468
        %v518 = vadd.f32 %v517, %v484
        %v519 = vrot.slane %v518, 4
        %v520 = vadd.f32 %v518, %v519
        %v521 = vrot.slane %v520, 2
        %v522 = vadd.f32 %v520, %v521
        %v523 = vrot.slane %v522, 1
        %v524 = vadd.f32 %v522, %v523
        %v525 = vadd.f32 %v437, %v453
        %v526 = vadd.f32 %v525, %v469
        %v527 = vadd.f32 %v526, %v485
        %v528 = vrot.slane %v527, 4
        %v529 = vadd.f32 %v527, %v528
        %v530 = vrot.slane %v529, 2
        %v531 = vadd.f32 %v529, %v530
        %v532 = vrot.slane %v531, 1
        %v533 = vadd.f32 %v531, %v532
        %v534 = vadd.f32 %v438, %v454
        %v535 = vadd.f32 %v534, %v470
        %v536 = vadd.f32 %v535, %v486
        %v537 = vrot.slane %v536, 4
        %v538 = vadd.f32 %v536, %v537
        %v539 = vrot.slane %v538, 2
        %v540 = vadd.f32 %v538, %v539
        %v541 = vrot.slane %v540, 1
        %v542 = vadd.f32 %v540, %v541
        %v543 = vadd.f32 %v439, %v455
        %v544 = vadd.f32 %v543, %v471
        %v545 = vadd.f32 %v544, %v487
        %v546 = vrot.slane %v545, 4
        %v547 = vadd.f32 %v545, %v546
        %v548 = vrot.slane %v547, 2
        %v549 = vadd.f32 %v547, %v548
        %v550 = vrot.slane %v549, 1
        %v551 = vadd.f32 %v549, %v550
        %v552 = vadd.f32 %v440, %v456
        %v553 = vadd.f32 %v552, %v472
        %v554 = vadd.f32 %v553, %v488
        %v555 = vrot.slane %v554, 4
        %v556 = vadd.f32 %v554, %v555
        %v557 = vrot.slane %v556, 2
        %v558 = vadd.f32 %v556, %v557
        %v559 = vrot.slane %v558, 1
        %v560 = vadd.f32 %v558, %v559
        %v561 = vadd.f32 %v441, %v457
        %v562 = vadd.f32 %v561, %v473
        %v563 = vadd.f32 %v562, %v489
        %v564 = vrot.slane %v563, 4
        %v565 = vadd.f32 %v563, %v564
        %v566 = vrot.slane %v565, 2
        %v567 = vadd.f32 %v565, %v566
        %v568 = vrot.slane %v567, 1
        %v569 = vadd.f32 %v567, %v568
        %v570 = vadd.f32 %v442, %v458
        %v571 = vadd.f32 %v570, %v474
        %v572 = vadd.f32 %v571, %v490
        %v573 = vrot.slane %v572, 4
        %v574 = vadd.f32 %v572, %v573
        %v575 = vrot.slane %v574, 2
        %v576 = vadd.f32 %v574, %v575
        %v577 = vrot.slane %v576, 1
        %v578 = vadd.f32 %v576, %v577
        %v579 = vadd.f32 %v443, %v459
        %v580 = vadd.f32 %v579, %v475
        %v581 = vadd.f32 %v580, %v491
        %v582 = vrot.slane %v581, 4
        %v583 = vadd.f32 %v581, %v582
        %v584 = vrot.slane %v583, 2
        %v585 = vadd.f32 %v583, %v584
        %v586 = vrot.slane %v585, 1
        %v587 = vadd.f32 %v585, %v586
        %v588 = vadd.f32 %v444, %v460
        %v589 = vadd.f32 %v588, %v476
        %v590 = vadd.f32 %v589, %v492
        %v591 = vrot.slane %v590, 4
        %v592 = vadd.f32 %v590, %v591
        %v593 = vrot.slane %v592, 2
        %v594 = vadd.f32 %v592, %v593
        %v595 = vrot.slane %v594, 1
        %v596 = vadd.f32 %v594, %v595
        %v597 = vadd.f32 %v445, %v461
        %v598 = vadd.f32 %v597, %v477
        %v599 = vadd.f32 %v598, %v493
        %v600 = vrot.slane %v599, 4
        %v601 = vadd.f32 %v599, %v600
        %v602 = vrot.slane %v601, 2
        %v603 = vadd.f32 %v601, %v602
        %v604 = vrot.slane %v603, 1
        %v605 = vadd.f32 %v603, %v604
        %v606 = vadd.f32 %v446, %v462
        %v607 = vadd.f32 %v606, %v478
        %v608 = vadd.f32 %v607, %v494
        %v609 = vrot.slane %v608, 4
        %v610 = vadd.f32 %v608, %v609
        %v611 = vrot.slane %v610, 2
        %v612 = vadd.f32 %v610, %v611
        %v613 = vrot.slane %v612, 1
        %v614 = vadd.f32 %v612, %v613
        %v615 = vadd.f32 %v447, %v463
        %v616 = vadd.f32 %v615, %v479
        %v617 = vadd.f32 %v616, %v495
        %v618 = vrot.slane %v617, 4
        %v619 = vadd.f32 %v617, %v618
        %v620 = vrot.slane %v619, 2
        %v621 = vadd.f32 %v619, %v620
        %v622 = vrot.slane %v621, 1
        %v623 = vadd.f32 %v621, %v622
        %v624 = vadd.f32 %v448, %v464
        %v625 = vadd.f32 %v624, %v480
        %v626 = vadd.f32 %v625, %v496
        %v627 = vrot.slane %v626, 4
        %v628 = vadd.f32 %v626, %v627
        %v629 = vrot.slane %v628, 2
        %v630 = vadd.f32 %v628, %v629
        %v631 = vrot.slane %v630, 1
        %v632 = vadd.f32 %v630, %v631
        %v633 = vadd.f32 %v449, %v465
        %v634 = vadd.f32 %v633, %v481
        %v635 = vadd.f32 %v634, %v497
        %v636 = vrot.slane %v635, 4
        %v637 = vadd.f32 %v635, %v636
        %v638 = vrot.slane %v637, 2
        %v639 = vadd.f32 %v637, %v638
        %v640 = vrot.slane %v639, 1
        %v641 = vadd.f32 %v639, %v640
        %v642 = vmul.f32 %v506, %v417
        %v643 = vmul.f32 %v515, %v417
        %v644 = vmul.f32 %v524, %v417
        %v645 = vmul.f32 %v533, %v417
        %v646 = vmul.f32 %v542, %v417
        %v647 = vmul.f32 %v551, %v417
        %v648 = vmul.f32 %v560, %v417
        %v649 = vmul.f32 %v569, %v417
        %v650 = vmul.f32 %v578, %v417
        %v651 = vmul.f32 %v587, %v417
        %v652 = vmul.f32 %v596, %v417
        %v653 = vmul.f32 %v605, %v417
        %v654 = vmul.f32 %v614, %v417
        %v655 = vmul.f32 %v623, %v417
        %v656 = vmul.f32 %v632, %v417
        %v657 = vmul.f32 %v641, %v417
        %v658 = vmul.f32 %v418, %v418
        %v659 = vmul.f32 %v419, %v419
        %v660 = vmul.f32 %v420, %v420
        %v661 = vmul.f32 %v421, %v421
        %v662 = vmul.f32 %v422, %v422
        %v663 = vmul.f32 %v423, %v423
        %v664 = vmul.f32 %v424, %v424
        %v665 = vmul.f32 %v425, %v425
        %v666 = vmul.f32 %v426, %v426
        %v667 = vmul.f32 %v427, %v427
        %v668 = vmul.f32 %v428, %v428
        %v669 = vmul.f32 %v429, %v429
        %v670 = vmul.f32 %v430, %v430
        %v671 = vmul.f32 %v431, %v431
        %v672 = vmul.f32 %v432, %v432
        %v673 = vmul.f32 %v433, %v433
        %v674 = vsub.f32 %v642, %v658
        %v675 = vsub.f32 %v643, %v659
        %v676 = vsub.f32 %v644, %v660
        %v677 = vsub.f32 %v645, %v661
        %v678 = vsub.f32 %v646, %v662
        %v679 = vsub.f32 %v647, %v663
        %v680 = vsub.f32 %v648, %v664
        %v681 = vsub.f32 %v649, %v665
        %v682 = vsub.f32 %v650, %v666
        %v683 = vsub.f32 %v651, %v667
        %v684 = vsub.f32 %v652, %v668
        %v685 = vsub.f32 %v653, %v669
        %v686 = vsub.f32 %v654, %v670
        %v687 = vsub.f32 %v655, %v671
        %v688 = vsub.f32 %v656, %v672
        %v689 = vsub.f32 %v657, %v673
        %v690 = vmax.f32 %v674, 0.0
        %v691 = vmax.f32 %v675, 0.0
        %v692 = vmax.f32 %v676, 0.0
        %v693 = vmax.f32 %v677, 0.0
        %v694 = vmax.f32 %v678, 0.0
        %v695 = vmax.f32 %v679, 0.0
        %v696 = vmax.f32 %v680, 0.0
        %v697 = vmax.f32 %v681, 0.0
        %v698 = vmax.f32 %v682, 0.0
        %v699 = vmax.f32 %v683, 0.0
        %v700 = vmax.f32 %v684, 0.0
        %v701 = vmax.f32 %v685, 0.0
        %v702 = vmax.f32 %v686, 0.0
        %v703 = vmax.f32 %v687, 0.0
        %v704 = vmax.f32 %v688, 0.0
        %v705 = vmax.f32 %v689, 0.0
        %v706 = vadd.f32 %v690, 1e-05
        %v707 = vadd.f32 %v691, 1e-05
        %v708 = vadd.f32 %v692, 1e-05
        %v709 = vadd.f32 %v693, 1e-05
        %v710 = vadd.f32 %v694, 1e-05
        %v711 = vadd.f32 %v695, 1e-05
        %v712 = vadd.f32 %v696, 1e-05
        %v713 = vadd.f32 %v697, 1e-05
        %v714 = vadd.f32 %v698, 1e-05
        %v715 = vadd.f32 %v699, 1e-05
        %v716 = vadd.f32 %v700, 1e-05
        %v717 = vadd.f32 %v701, 1e-05
        %v718 = vadd.f32 %v702, 1e-05
        %v719 = vadd.f32 %v703, 1e-05
        %v720 = vadd.f32 %v704, 1e-05
        %v721 = vadd.f32 %v705, 1e-05
        %v722 = vrsqrt.pop %v706
        %v723 = vrsqrt.pop %v707
        %v724 = vrsqrt.pop %v708
        %v725 = vrsqrt.pop %v709
        %v726 = vrsqrt.pop %v710
        %v727 = vrsqrt.pop %v711
        %v728 = vrsqrt.pop %v712
        %v729 = vrsqrt.pop %v713
        %v730 = vrsqrt.pop %v714
        %v731 = vrsqrt.pop %v715
        %v732 = vrsqrt.pop %v716
        %v733 = vrsqrt.pop %v717
        %v734 = vrsqrt.pop %v718
        %v735 = vrsqrt.pop %v719
        %v736 = vrsqrt.pop %v720
        %v737 = vrsqrt.pop %v721
        %v738 = vsub.f32 %v209, %v418
        %v739 = vsub.f32 %v210, %v419
        %v740 = vsub.f32 %v211, %v420
        %v741 = vsub.f32 %v212, %v421
        %v742 = vsub.f32 %v213, %v422
        %v743 = vsub.f32 %v214, %v423
        %v744 = vsub.f32 %v215, %v424
        %v745 = vsub.f32 %v216, %v425
        %v746 = vsub.f32 %v217, %v426
        %v747 = vsub.f32 %v218, %v427
        %v748 = vsub.f32 %v219, %v428
        %v749 = vsub.f32 %v220, %v429
        %v750 = vsub.f32 %v221, %v430
        %v751 = vsub.f32 %v222, %v431
        %v752 = vsub.f32 %v223, %v432
        %v753 = vsub.f32 %v224, %v433
        %v754 = vsub.f32 %v225, %v418
        %v755 = vsub.f32 %v226, %v419
        %v756 = vsub.f32 %v227, %v420
        %v757 = vsub.f32 %v228, %v421
        %v758 = vsub.f32 %v229, %v422
        %v759 = vsub.f32 %v230, %v423
        %v760 = vsub.f32 %v231, %v424
        %v761 = vsub.f32 %v232, %v425
        %v762 = vsub.f32 %v233, %v426
        %v763 = vsub.f32 %v234, %v427
        %v764 = vsub.f32 %v235, %v428
        %v765 = vsub.f32 %v236, %v429
        %v766 = vsub.f32 %v237, %v430
        %v767 = vsub.f32 %v238, %v431
        %v768 = vsub.f32 %v239, %v432
        %v769 = vsub.f32 %v240, %v433
        %v770 = vsub.f32 %v241, %v418
        %v771 = vsub.f32 %v242, %v419
        %v772 = vsub.f32 %v243, %v420
        %v773 = vsub.f32 %v244, %v421
        %v774 = vsub.f32 %v245, %v422
        %v775 = vsub.f32 %v246, %v423
        %v776 = vsub.f32 %v247, %v424
        %v777 = vsub.f32 %v248, %v425
        %v778 = vsub.f32 %v249, %v426
        %v779 = vsub.f32 %v250, %v427
        %v780 = vsub.f32 %v251, %v428
        %v781 = vsub.f32 %v252, %v429
        %v782 = vsub.f32 %v253, %v430
        %v783 = vsub.f32 %v254, %v431
        %v784 = vsub.f32 %v255, %v432
        %v785 = vsub.f32 %v256, %v433
        %v786 = vsub.f32 %v257, %v418
        %v787 = vsub.f32 %v258, %v419
        %v788 = vsub.f32 %v259, %v420
        %v789 = vsub.f32 %v260, %v421
        %v790 = vsub.f32 %v261, %v422
        %v791 = vsub.f32 %v262, %v423
        %v792 = vsub.f32 %v263, %v424
        %v793 = vsub.f32 %v264, %v425
        %v794 = vsub.f32 %v265, %v426
        %v795 = vsub.f32 %v266, %v427
        %v796 = vsub.f32 %v267, %v428
        %v797 = vsub.f32 %v268, %v429
        %v798 = vsub.f32 %v269, %v430
        %v799 = vsub.f32 %v270, %v431
        %v800 = vsub.f32 %v271, %v432
        %v801 = vsub.f32 %v272, %v433
        %v802 = vmul.f32 %v738, %v722
        %v803 = vmul.f32 %v739, %v723
        %v804 = vmul.f32 %v740, %v724
        %v805 = vmul.f32 %v741, %v725
        %v806 = vmul.f32 %v742, %v726
        %v807 = vmul.f32 %v743, %v727
        %v808 = vmul.f32 %v744, %v728
        %v809 = vmul.f32 %v745, %v729
        %v810 = vmul.f32 %v746, %v730
        %v811 = vmul.f32 %v747, %v731
        %v812 = vmul.f32 %v748, %v732
        %v813 = vmul.f32 %v749, %v733
        %v814 = vmul.f32 %v750, %v734
        %v815 = vmul.f32 %v751, %v735
        %v816 = vmul.f32 %v752, %v736
        %v817 = vmul.f32 %v753, %v737
        %v818 = vmul.f32 %v754, %v722
        %v819 = vmul.f32 %v755, %v723
        %v820 = vmul.f32 %v756, %v724
        %v821 = vmul.f32 %v757, %v725
        %v822 = vmul.f32 %v758, %v726
        %v823 = vmul.f32 %v759, %v727
        %v824 = vmul.f32 %v760, %v728
        %v825 = vmul.f32 %v761, %v729
        %v826 = vmul.f32 %v762, %v730
        %v827 = vmul.f32 %v763, %v731
        %v828 = vmul.f32 %v764, %v732
        %v829 = vmul.f32 %v765, %v733
        %v830 = vmul.f32 %v766, %v734
        %v831 = vmul.f32 %v767, %v735
        %v832 = vmul.f32 %v768, %v736
        %v833 = vmul.f32 %v769, %v737
        %v834 = vmul.f32 %v770, %v722
        %v835 = vmul.f32 %v771, %v723
        %v836 = vmul.f32 %v772, %v724
        %v837 = vmul.f32 %v773, %v725
        %v838 = vmul.f32 %v774, %v726
        %v839 = vmul.f32 %v775, %v727
        %v840 = vmul.f32 %v776, %v728
        %v841 = vmul.f32 %v777, %v729
        %v842 = vmul.f32 %v778, %v730
        %v843 = vmul.f32 %v779, %v731
        %v844 = vmul.f32 %v780, %v732
        %v845 = vmul.f32 %v781, %v733
        %v846 = vmul.f32 %v782, %v734
        %v847 = vmul.f32 %v783, %v735
        %v848 = vmul.f32 %v784, %v736
        %v849 = vmul.f32 %v785, %v737
        %v850 = vmul.f32 %v786, %v722
        %v851 = vmul.f32 %v787, %v723
        %v852 = vmul.f32 %v788, %v724
        %v853 = vmul.f32 %v789, %v725
        %v854 = vmul.f32 %v790, %v726
        %v855 = vmul.f32 %v791, %v727
        %v856 = vmul.f32 %v792, %v728
        %v857 = vmul.f32 %v793, %v729
        %v858 = vmul.f32 %v794, %v730
        %v859 = vmul.f32 %v795, %v731
        %v860 = vmul.f32 %v796, %v732
        %v861 = vmul.f32 %v797, %v733
        %v862 = vmul.f32 %v798, %v734
        %v863 = vmul.f32 %v799, %v735
        %v864 = vmul.f32 %v800, %v736
        %v865 = vmul.f32 %v801, %v737
        %v866 = vld [vmem:[%s1] sm:$0xff]
        %v867 = vld [vmem:[%s1 + $0x8] sm:$0xff]
        %v868 = vld [vmem:[%s1 + $0x10] sm:$0xff]
        %v869 = vld [vmem:[%s1 + $0x18] sm:$0xff]
        %871 = vset.pattern.permute.xlu0 0
        %872 = vperm.xlu0 %871, %v866
        %v873 = vpop.permute.xlu0 %872
        %876 = vset.pattern.permute.xlu0 0
        %877 = vperm.xlu0 %876, %v867
        %v878 = vpop.permute.xlu0 %877
        %881 = vset.pattern.permute.xlu0 0
        %882 = vperm.xlu0 %881, %v868
        %v883 = vpop.permute.xlu0 %882
        %886 = vset.pattern.permute.xlu0 0
        %887 = vperm.xlu0 %886, %v869
        %v888 = vpop.permute.xlu0 %887
        %v890 = vmul.f32 %v802, %v873
        %v891 = vmul.f32 %v803, %v873
        %v892 = vmul.f32 %v804, %v873
        %v893 = vmul.f32 %v805, %v873
        %v894 = vmul.f32 %v806, %v873
        %v895 = vmul.f32 %v807, %v873
        %v896 = vmul.f32 %v808, %v873
        %v897 = vmul.f32 %v809, %v873
        %v898 = vmul.f32 %v810, %v873
        %v899 = vmul.f32 %v811, %v873
        %v900 = vmul.f32 %v812, %v873
        %v901 = vmul.f32 %v813, %v873
        %v902 = vmul.f32 %v814, %v873
        %v903 = vmul.f32 %v815, %v873
        %v904 = vmul.f32 %v816, %v873
        %v905 = vmul.f32 %v817, %v873
        %v906 = vmul.f32 %v818, %v878
        %v907 = vmul.f32 %v819, %v878
        %v908 = vmul.f32 %v820, %v878
        %v909 = vmul.f32 %v821, %v878
        %v910 = vmul.f32 %v822, %v878
        %v911 = vmul.f32 %v823, %v878
        %v912 = vmul.f32 %v824, %v878
        %v913 = vmul.f32 %v825, %v878
        %v914 = vmul.f32 %v826, %v878
        %v915 = vmul.f32 %v827, %v878
        %v916 = vmul.f32 %v828, %v878
        %v917 = vmul.f32 %v829, %v878
        %v918 = vmul.f32 %v830, %v878
        %v919 = vmul.f32 %v831, %v878
        %v920 = vmul.f32 %v832, %v878
        %v921 = vmul.f32 %v833, %v878
        %v922 = vmul.f32 %v834, %v883
        %v923 = vmul.f32 %v835, %v883
        %v924 = vmul.f32 %v836, %v883
        %v925 = vmul.f32 %v837, %v883
        %v926 = vmul.f32 %v838, %v883
        %v927 = vmul.f32 %v839, %v883
        %v928 = vmul.f32 %v840, %v883
        %v929 = vmul.f32 %v841, %v883
        %v930 = vmul.f32 %v842, %v883
        %v931 = vmul.f32 %v843, %v883
        %v932 = vmul.f32 %v844, %v883
        %v933 = vmul.f32 %v845, %v883
        %v934 = vmul.f32 %v846, %v883
        %v935 = vmul.f32 %v847, %v883
        %v936 = vmul.f32 %v848, %v883
        %v937 = vmul.f32 %v849, %v883
        %v938 = vmul.f32 %v850, %v888
        %v939 = vmul.f32 %v851, %v888
        %v940 = vmul.f32 %v852, %v888
        %v941 = vmul.f32 %v853, %v888
        %v942 = vmul.f32 %v854, %v888
        %v943 = vmul.f32 %v855, %v888
        %v944 = vmul.f32 %v856, %v888
        %v945 = vmul.f32 %v857, %v888
        %v946 = vmul.f32 %v858, %v888
        %v947 = vmul.f32 %v859, %v888
        %v948 = vmul.f32 %v860, %v888
        %v949 = vmul.f32 %v861, %v888
        %v950 = vmul.f32 %v862, %v888
        %v951 = vmul.f32 %v863, %v888
        %v952 = vmul.f32 %v864, %v888
        %v953 = vmul.f32 %v865, %v888
        %v954 = vld [vmem:[%s2] sm:$0xff]
        %v955 = vld [vmem:[%s2 + $0x8] sm:$0xff]
        %v956 = vld [vmem:[%s2 + $0x10] sm:$0xff]
        %v957 = vld [vmem:[%s2 + $0x18] sm:$0xff]
        %959 = vset.pattern.permute.xlu0 0
        %960 = vperm.xlu0 %959, %v954
        %v961 = vpop.permute.xlu0 %960
        %964 = vset.pattern.permute.xlu0 0
        %965 = vperm.xlu0 %964, %v955
        %v966 = vpop.permute.xlu0 %965
        %969 = vset.pattern.permute.xlu0 0
        %970 = vperm.xlu0 %969, %v956
        %v971 = vpop.permute.xlu0 %970
        %974 = vset.pattern.permute.xlu0 0
        %975 = vperm.xlu0 %974, %v957
        %v976 = vpop.permute.xlu0 %975
        %v978 = vadd.f32 %v890, %v961
        %v979 = vadd.f32 %v891, %v961
        %v980 = vadd.f32 %v892, %v961
        %v981 = vadd.f32 %v893, %v961
        %v982 = vadd.f32 %v894, %v961
        %v983 = vadd.f32 %v895, %v961
        %v984 = vadd.f32 %v896, %v961
        %v985 = vadd.f32 %v897, %v961
        %v986 = vadd.f32 %v898, %v961
        %v987 = vadd.f32 %v899, %v961
        %v988 = vadd.f32 %v900, %v961
        %v989 = vadd.f32 %v901, %v961
        %v990 = vadd.f32 %v902, %v961
        %v991 = vadd.f32 %v903, %v961
        %v992 = vadd.f32 %v904, %v961
        %v993 = vadd.f32 %v905, %v961
        %v994 = vadd.f32 %v906, %v966
        %v995 = vadd.f32 %v907, %v966
        %v996 = vadd.f32 %v908, %v966
        %v997 = vadd.f32 %v909, %v966
        %v998 = vadd.f32 %v910, %v966
        %v999 = vadd.f32 %v911, %v966
        %v1000 = vadd.f32 %v912, %v966
        %v1001 = vadd.f32 %v913, %v966
        %v1002 = vadd.f32 %v914, %v966
        %v1003 = vadd.f32 %v915, %v966
        %v1004 = vadd.f32 %v916, %v966
        %v1005 = vadd.f32 %v917, %v966
        %v1006 = vadd.f32 %v918, %v966
        %v1007 = vadd.f32 %v919, %v966
        %v1008 = vadd.f32 %v920, %v966
        %v1009 = vadd.f32 %v921, %v966
        %v1010 = vadd.f32 %v922, %v971
        %v1011 = vadd.f32 %v923, %v971
        %v1012 = vadd.f32 %v924, %v971
        %v1013 = vadd.f32 %v925, %v971
        %v1014 = vadd.f32 %v926, %v971
        %v1015 = vadd.f32 %v927, %v971
        %v1016 = vadd.f32 %v928, %v971
        %v1017 = vadd.f32 %v929, %v971
        %v1018 = vadd.f32 %v930, %v971
        %v1019 = vadd.f32 %v931, %v971
        %v1020 = vadd.f32 %v932, %v971
        %v1021 = vadd.f32 %v933, %v971
        %v1022 = vadd.f32 %v934, %v971
        %v1023 = vadd.f32 %v935, %v971
        %v1024 = vadd.f32 %v936, %v971
        %v1025 = vadd.f32 %v937, %v971
        %v1026 = vadd.f32 %v938, %v976
        %v1027 = vadd.f32 %v939, %v976
        %v1028 = vadd.f32 %v940, %v976
        %v1029 = vadd.f32 %v941, %v976
        %v1030 = vadd.f32 %v942, %v976
        %v1031 = vadd.f32 %v943, %v976
        %v1032 = vadd.f32 %v944, %v976
        %v1033 = vadd.f32 %v945, %v976
        %v1034 = vadd.f32 %v946, %v976
        %v1035 = vadd.f32 %v947, %v976
        %v1036 = vadd.f32 %v948, %v976
        %v1037 = vadd.f32 %v949, %v976
        %v1038 = vadd.f32 %v950, %v976
        %v1039 = vadd.f32 %v951, %v976
        %v1040 = vadd.f32 %v952, %v976
        %v1041 = vadd.f32 %v953, %v976
        %1042 = vst [vmem:[%s206] sm:$0xff] %v978
        %1043 = vst [vmem:[%s206 + $0x8] sm:$0xff] %v979
        %1044 = vst [vmem:[%s206 + $0x10] sm:$0xff] %v980
        %1045 = vst [vmem:[%s206 + $0x18] sm:$0xff] %v981
        %1046 = vst [vmem:[%s206 + $0x20] sm:$0xff] %v982
        %1047 = vst [vmem:[%s206 + $0x28] sm:$0xff] %v983
        %1048 = vst [vmem:[%s206 + $0x30] sm:$0xff] %v984
        %1049 = vst [vmem:[%s206 + $0x38] sm:$0xff] %v985
        %1050 = vst [vmem:[%s206 + $0x40] sm:$0xff] %v986
        %1051 = vst [vmem:[%s206 + $0x48] sm:$0xff] %v987
        %1052 = vst [vmem:[%s206 + $0x50] sm:$0xff] %v988
        %1053 = vst [vmem:[%s206 + $0x58] sm:$0xff] %v989
        %1054 = vst [vmem:[%s206 + $0x60] sm:$0xff] %v990
        %1055 = vst [vmem:[%s206 + $0x68] sm:$0xff] %v991
        %1056 = vst [vmem:[%s206 + $0x70] sm:$0xff] %v992
        %1057 = vst [vmem:[%s206 + $0x78] sm:$0xff] %v993
        %1058 = vst [vmem:[%s206 + $0x80] sm:$0xff] %v994
        %1059 = vst [vmem:[%s206 + $0x88] sm:$0xff] %v995
        %1060 = vst [vmem:[%s206 + $0x90] sm:$0xff] %v996
        %1061 = vst [vmem:[%s206 + $0x98] sm:$0xff] %v997
        %1062 = vst [vmem:[%s206 + $0xa0] sm:$0xff] %v998
        %1063 = vst [vmem:[%s206 + $0xa8] sm:$0xff] %v999
        %1064 = vst [vmem:[%s206 + $0xb0] sm:$0xff] %v1000
        %1065 = vst [vmem:[%s206 + $0xb8] sm:$0xff] %v1001
        %1066 = vst [vmem:[%s206 + $0xc0] sm:$0xff] %v1002
        %1067 = vst [vmem:[%s206 + $0xc8] sm:$0xff] %v1003
        %1068 = vst [vmem:[%s206 + $0xd0] sm:$0xff] %v1004
        %1069 = vst [vmem:[%s206 + $0xd8] sm:$0xff] %v1005
        %1070 = vst [vmem:[%s206 + $0xe0] sm:$0xff] %v1006
        %1071 = vst [vmem:[%s206 + $0xe8] sm:$0xff] %v1007
        %1072 = vst [vmem:[%s206 + $0xf0] sm:$0xff] %v1008
        %1073 = vst [vmem:[%s206 + $0xf8] sm:$0xff] %v1009
        %1074 = vst [vmem:[%s206 + $0x100] sm:$0xff] %v1010
        %1075 = vst [vmem:[%s206 + $0x108] sm:$0xff] %v1011
        %1076 = vst [vmem:[%s206 + $0x110] sm:$0xff] %v1012
        %1077 = vst [vmem:[%s206 + $0x118] sm:$0xff] %v1013
        %1078 = vst [vmem:[%s206 + $0x120] sm:$0xff] %v1014
        %1079 = vst [vmem:[%s206 + $0x128] sm:$0xff] %v1015
        %1080 = vst [vmem:[%s206 + $0x130] sm:$0xff] %v1016
        %1081 = vst [vmem:[%s206 + $0x138] sm:$0xff] %v1017
        %1082 = vst [vmem:[%s206 + $0x140] sm:$0xff] %v1018
        %1083 = vst [vmem:[%s206 + $0x148] sm:$0xff] %v1019
        %1084 = vst [vmem:[%s206 + $0x150] sm:$0xff] %v1020
        %1085 = vst [vmem:[%s206 + $0x158] sm:$0xff] %v1021
        %1086 = vst [vmem:[%s206 + $0x160] sm:$0xff] %v1022
        %1087 = vst [vmem:[%s206 + $0x168] sm:$0xff] %v1023
        %1088 = vst [vmem:[%s206 + $0x170] sm:$0xff] %v1024
        %1089 = vst [vmem:[%s206 + $0x178] sm:$0xff] %v1025
        %1090 = vst [vmem:[%s206 + $0x180] sm:$0xff] %v1026
        %1091 = vst [vmem:[%s206 + $0x188] sm:$0xff] %v1027
        %1092 = vst [vmem:[%s206 + $0x190] sm:$0xff] %v1028
        %1093 = vst [vmem:[%s206 + $0x198] sm:$0xff] %v1029
        %1094 = vst [vmem:[%s206 + $0x1a0] sm:$0xff] %v1030
        %1095 = vst [vmem:[%s206 + $0x1a8] sm:$0xff] %v1031
        %1096 = vst [vmem:[%s206 + $0x1b0] sm:$0xff] %v1032
        %1097 = vst [vmem:[%s206 + $0x1b8] sm:$0xff] %v1033
        %1098 = vst [vmem:[%s206 + $0x1c0] sm:$0xff] %v1034
        %1099 = vst [vmem:[%s206 + $0x1c8] sm:$0xff] %v1035
        %1100 = vst [vmem:[%s206 + $0x1d0] sm:$0xff] %v1036
        %1101 = vst [vmem:[%s206 + $0x1d8] sm:$0xff] %v1037
        %1102 = vst [vmem:[%s206 + $0x1e0] sm:$0xff] %v1038
        %1103 = vst [vmem:[%s206 + $0x1e8] sm:$0xff] %v1039
        %1104 = vst [vmem:[%s206 + $0x1f0] sm:$0xff] %v1040
        %1105 = vst [vmem:[%s206 + $0x1f8] sm:$0xff] %v1041
        %s1106 = sand.u32 %s112, 1
        %s1107 = scalar_lea.sflag [#allocation4], %s1106
        %s1108 = sand.u32 %s112, 1
        %s1109 = smul.addr %s1108, 512
        %s1110 = scalar_lea.vmem [#allocation5], %s1109
        // Predicated region
        $region37: #{tpu_custom_call.1} parent=31 // pred_check
          %p1111 = pneg %p122
        $region38: #{tpu_custom_call.1} parent=31 // pred_check_branch
          %1113 = sbr.rel (%p1111) target = $region40
        $region39: #{tpu_custom_call.1} parent=31 // pred_region
          %s1114 = smul.u32 16, %s25
          %s1116 = ssub.s32 8192, 8192
          %1117 = vsyncadd %s1107, %s1116
          %s1118 = smul.addr %s24, 64
          %s1119 = sadd.s32 %s1114, %s1118
          %s1120 = smul.addr %s1119, 128
          %s1121 = scalar_lea.hbm %s3, %s1120
          %s1122 = sshll.u32 %s1110, 4
          %s1123 = int_to_ptr.vmem [resolvable:$true] %s1122
          %1128 = dma.vmem_to_hbm [thread:$0]  %s1123, 8192, %s1121, %s1107, 2048, 2048, 128
        $region40: #{tpu_custom_call.1} parent=31 // pred_fallthru
          _
      $region32: #{tpu_custom_call.1} parent=5 // pred_fallthru
        _
      %p1129 = scmp.le.s32.totalorder 2, %s15
      // Predicated region
      $region41: #{tpu_custom_call.1} parent=5 // pred_check
        %p1130 = pneg %p1129
      $region42: #{tpu_custom_call.1} parent=5 // pred_check_branch
        %1132 = sbr.rel (%p1130) target = $region44
      $region43: #{tpu_custom_call.1} parent=5 // pred_region
        %s1133 = ssub.s32 %s15, 2
        // Predicated region
        $region45: #{tpu_custom_call.1} parent=43 // pred_check
          %p1134 = pneg %p128
        $region46: #{tpu_custom_call.1} parent=43 // pred_check_branch
          %1136 = sbr.rel (%p1134) target = $region48
        $region47: #{tpu_custom_call.1} parent=43 // pred_region
          %s1137 = sand.u32 %s113, 1
          %s1138 = scalar_lea.sflag [#allocation4], %s1137
          %s1139 = sand.u32 %s113, 1
          %s1140 = smul.addr %s1139, 512
          %s1141 = scalar_lea.vmem [#allocation5], %s1140
          %1142 = dma.done %s1138, 8192
        $region48: #{tpu_custom_call.1} parent=43 // pred_fallthru
          _
      $region44: #{tpu_custom_call.1} parent=5 // pred_fallthru
        _
    $region6: #{tpu_custom_call.1} parent=1 // loop_footer
      %s19 = sadd.s32 1, %s15
    $region7: #{tpu_custom_call.1} parent=1 // loop_footer_branch
      %14 = sbr.rel target = $region3
    $region8: #{tpu_custom_call.1} parent=1 // loop_exit
      _
    %1143 = vsyncpa [#allocation3], 1
    %s1144 = scalar_lea.sflag [#allocation3], 1
    %1145 = vsyncpa %s1144, 1
    %1146 = vsyncpa [#allocation4], 1
    %s1147 = scalar_lea.sflag [#allocation4], 1
    %1148 = vsyncpa %s1147, 1

</llo_original>
